<compile_context>
chip_gen: v7x
topology: tpu7x:2x2x1
jax: 0.10.0
libtpu: 0.0.40
codegen_flags: <defaults>
</compile_context>

<pallas_src>
import functools

import jax
import jax.numpy as jnp
from jax.experimental import pallas as pl
from jax.experimental.pallas import tpu as pltpu


# ---------------------------------------------------------------------------
# helpers
# ---------------------------------------------------------------------------

def _pick_spatial_block(hw, target_elems=32768):
    """Largest lane-dense (multiple of 128) block that divides hw, capped at target.

    Falls back to the full spatial extent (always legal: block dim == array dim).
    """
    if hw <= target_elems:
        return hw
    blk = (target_elems // 128) * 128
    while blk >= 128:
        if hw % blk == 0:
            return blk
        blk -= 128
    return hw


# ---------------------------------------------------------------------------
# Pallas kernels
# ---------------------------------------------------------------------------

def _split_kernel(x_ref, o1_ref, o2_ref, *, c1):
    # x_ref block: (1, C, blk); outputs: (1, c1, blk) and (1, C-c1, blk).
    x = x_ref[...]
    o1_ref[...] = x[:, :c1, :]
    o2_ref[...] = x[:, c1:, :]


def _concat_kernel(x1_ref, x2_ref, o_ref, *, c1):
    # o_ref block: (1, c1+c2, blk); the two static sublane slices cover it fully.
    o_ref[:, :c1, :] = x1_ref[...]
    o_ref[:, c1:, :] = x2_ref[...]


# ---------------------------------------------------------------------------
# wrappers (forward = split along channels, reverse = channel concat)
# ---------------------------------------------------------------------------

def split_forward(x):
    """x: (N, C, H, W) -> (x[:, :C//2], x[:, C//2:]) — PyTorch Split forward (rev=False)."""
    n, c, h, w = x.shape
    assert c >= 2, "Split needs at least 2 channels"
    c1 = c // 2
    c2 = c - c1
    hw = h * w
    blk = _pick_spatial_block(hw)
    grid = (n, hw // blk)

    x3 = x.reshape(n, c, hw)  # channels -> sublanes, spatial -> lanes (lane-dense)

    out1, out2 = pl.pallas_call(
        functools.partial(_split_kernel, c1=c1),
        out_shape=(jax.ShapeDtypeStruct((n, c1, hw), x.dtype),
                   jax.ShapeDtypeStruct((n, c2, hw), x.dtype)),
        grid_spec=pltpu.PrefetchScalarGridSpec(
            num_scalar_prefetch=0,
            grid=grid,
            in_specs=[pl.BlockSpec((1, c, blk), lambda i, s: (i, 0, s))],
            out_specs=[pl.BlockSpec((1, c1, blk), lambda i, s: (i, 0, s)),
                       pl.BlockSpec((1, c2, blk), lambda i, s: (i, 0, s))],
        ),
        compiler_params=pltpu.CompilerParams(
            dimension_semantics=("parallel", "parallel")),
    )(x3)

    return out1.reshape(n, c1, h, w), out2.reshape(n, c2, h, w)


def split_reverse(x, y):
    """(x, y) -> cat([x, y], dim=1) — PyTorch Split forward with rev=True."""
    n, c1, h, w = x.shape
    n2, c2, h2, w2 = y.shape
    assert (n, h, w) == (n2, h2, w2)
    c = c1 + c2
    hw = h * w
    blk = _pick_spatial_block(hw)
    grid = (n, hw // blk)

    x3 = x.reshape(n, c1, hw)
    y3 = y.reshape(n, c2, hw)

    out = pl.pallas_call(
        functools.partial(_concat_kernel, c1=c1),
        out_shape=jax.ShapeDtypeStruct((n, c, hw), x.dtype),
        grid_spec=pltpu.PrefetchScalarGridSpec(
            num_scalar_prefetch=0,
            grid=grid,
            in_specs=[pl.BlockSpec((1, c1, blk), lambda i, s: (i, 0, s)),
                      pl.BlockSpec((1, c2, blk), lambda i, s: (i, 0, s))],
            out_specs=pl.BlockSpec((1, c, blk), lambda i, s: (i, 0, s)),
        ),
        compiler_params=pltpu.CompilerParams(
            dimension_semantics=("parallel", "parallel")),
    )(x3, y3)

    return out.reshape(n, c, h, w)


# ---------------------------------------------------------------------------
# main
# ---------------------------------------------------------------------------

if __name__ == "__main__":
    key = jax.random.PRNGKey(0)
    batch, channels, spatial = 2, 4, 16
    x = jax.random.normal(key, (batch, channels, spatial, spatial), jnp.float32)

    fwd = jax.jit(split_forward)
    rev = jax.jit(split_reverse)

    # forward: split along channels
    x1, x2 = fwd(x)
    jax.block_until_ready((x1, x2))

    c_half = channels // 2
    assert x1.shape == (batch, c_half, spatial, spatial)
    assert x2.shape == (batch, channels - c_half, spatial, spatial)
    assert bool(jnp.all(x1 == x[:, :c_half, :, :]))
    assert bool(jnp.all(x2 == x[:, c_half:, :, :]))

    # reverse: concat along channels, must reconstruct the input exactly
    x_rec = rev(x1, x2)
    jax.block_until_ready(x_rec)
    assert x_rec.shape == x.shape
    assert bool(jnp.all(x_rec == x))

    print("KERNEL_OK")
</pallas_src>

<mosaic_0001>
module attributes {stable_mosaic.version = 11 : i64} {
  func.func @_split_kernel(%arg0: i32, %arg1: i32, %arg2: memref<1x4x256xf32, #tpu.memory_space<vmem>>, %arg3: memref<1x2x256xf32, #tpu.memory_space<vmem>>, %arg4: memref<1x2x256xf32, #tpu.memory_space<vmem>>) attributes {dimension_semantics = [#tpu.dimension_semantics<parallel>, #tpu.dimension_semantics<parallel>], iteration_bounds = array<i64: 2, 1>, scalar_prefetch = 0 : i64, scratch_operands = 0 : i64, tpu.core_type = #tpu.core_type<tc>, window_params = [{transform_indices = @transform_0, window_bounds = array<i64: 1, 4, 256>}, {transform_indices = @transform_1, window_bounds = array<i64: 1, 2, 256>}, {transform_indices = @transform_2, window_bounds = array<i64: 1, 2, 256>}]} {
    %c0 = arith.constant 0 : index
    %c0_0 = arith.constant 0 : index
    %c0_1 = arith.constant 0 : index
    %0 = vector.load %arg2[%c0, %c0_0, %c0_1] : memref<1x4x256xf32, #tpu.memory_space<vmem>>, vector<1x4x256xf32>
    %1 = vector.extract_strided_slice %0 {offsets = [0, 0, 0], sizes = [1, 2, 256], strides = [1, 1, 1]} : vector<1x4x256xf32> to vector<1x2x256xf32>
    %c0_2 = arith.constant 0 : index
    %c0_3 = arith.constant 0 : index
    %c0_4 = arith.constant 0 : index
    %2 = vector.load %arg3[%c0_2, %c0_3, %c0_4] : memref<1x2x256xf32, #tpu.memory_space<vmem>>, vector<1x2x256xf32>
    tpu.vector_store %arg3[%c0_2, %c0_3, %c0_4], %1 {strides = array<i32>} : memref<1x2x256xf32, #tpu.memory_space<vmem>>, vector<1x2x256xf32>,
    %3 = vector.extract_strided_slice %0 {offsets = [0, 2, 0], sizes = [1, 2, 256], strides = [1, 1, 1]} : vector<1x4x256xf32> to vector<1x2x256xf32>
    %c0_5 = arith.constant 0 : index
    %c0_6 = arith.constant 0 : index
    %c0_7 = arith.constant 0 : index
    %4 = vector.load %arg4[%c0_5, %c0_6, %c0_7] : memref<1x2x256xf32, #tpu.memory_space<vmem>>, vector<1x2x256xf32>
    tpu.vector_store %arg4[%c0_5, %c0_6, %c0_7], %3 {strides = array<i32>} : memref<1x2x256xf32, #tpu.memory_space<vmem>>, vector<1x2x256xf32>,
    return
  }
  func.func @transform_0(%arg0: i32, %arg1: i32) -> (i32, i32, i32) {
    %c0_i32 = arith.constant 0 : i32
    %c0_i32_0 = arith.constant 0 : i32
    return %arg0, %c0_i32, %arg1 : i32, i32, i32
  }
  func.func @transform_1(%arg0: i32, %arg1: i32) -> (i32, i32, i32) {
    %c0_i32 = arith.constant 0 : i32
    %c0_i32_0 = arith.constant 0 : i32
    return %arg0, %c0_i32, %arg1 : i32, i32, i32
  }
  func.func @transform_2(%arg0: i32, %arg1: i32) -> (i32, i32, i32) {
    %c0_i32 = arith.constant 0 : i32
    %c0_i32_0 = arith.constant 0 : i32
    return %arg0, %c0_i32, %arg1 : i32, i32, i32
  }
}

</mosaic_0001>

<llo_original>
// kernel: split_forward.1
$region0: #{split_forward.1}
  #allocation0 [shape = 'u32[]', space=smem, size = 0x4, offset = 0x4, fixed_abs, tag = 'smem constant byte address 0x4 - core index']
  #allocation1 [shape = 'u32[144,128]{1,0:T(1,128)}', space=vmem, size = 0x12000, scoped, tag = 'internal scratch']
  %s0 = inlined_call_operand.vmem [shape: f32[2,4,256], index: 0, kind: input, shape index: {}]
  %s1 = inlined_call_operand.vmem [shape: f32[2,2,256], index: 1, kind: output, shape index: {0}]
  %s2 = inlined_call_operand.vmem [shape: f32[2,2,256], index: 2, kind: output, shape index: {1}]
  %3 = xla_tuple %s1, %s2
  %s4 = sld [smem:[#allocation0]]
  $region45: #{split_forward.1} parent=0
    _
  %s6 = ssub.s32 1, %s4
  %s7 = scalar_select 0, %s6, %s4
  loop: start=0, step=1, limit=4
  $region2: #{split_forward.1} parent=0 // loop_pre_header
    _
  $region3: #{split_forward.1} parent=0 // loop_header
    %s9 = sphi 0, %s13
    %p10 = scmp.ge.s32.totalorder %s9, 4
    %s16 = sphi 0, %s28
    %s17 = sphi 0, %s24
    %s18 = sphi 0, %s16
    %s19 = sphi 0, %s17
    %s20 = sphi 0, %s18
    %s21 = sphi 0, %s19
    %s33 = sphi 0, %s35
    %s36 = sphi 0, %s33
    %s37 = sphi 0, %s36
    %s53 = sphi 0, %s37
    %s61 = sphi 0, %s63
    %s64 = sphi 0, %s61
    %s65 = sphi 0, %s64
    %s81 = sphi 0, %s65
    %s89 = sphi 0, %s91
    %s92 = sphi 0, %s89
    %s93 = sphi 0, %s92
    %s109 = sphi 0, %s93
  $region4: #{split_forward.1} parent=0 // loop_header_branch
    %12 = sbr.rel (%p10) target = $region8
  $region5: #{split_forward.1} parent=0 // loop_body
    %s14 = ssub.s32 %s9, 1
    %s15 = ssub.s32 %s9, 2
    %s22 = sadd.s32 1, %s17
    %p23 = scmp.ge.s32.totalorder %s22, 1
    %s24 = scalar_select %p23, 0, %s22
    %s25 = sadd.s32 1, %s16
    %s26 = scalar_select %p23, %s25, %s16
    %p27 = scmp.ge.s32.totalorder %s26, 2
    %s28 = scalar_select %p27, 0, %s26
    %s29 = ssub.s32 %s16, %s28
    %s30 = ssub.s32 %s17, %s24
    %s31 = sor.u32 %s29, %s30
    %p32 = scmp.eq.s32.totalorder %s31, 0
    %s34 = sadd.s32 %s33, 1
    %s35 = scalar_select %p32, %s33, %s34
    %p38 = pneg %p32
    %p39 = scmp.eq.s32.totalorder %s9, 1
    %p40 = por %p38, %p39
    %p41 = scmp.ne.s32.totalorder %s33, %s36
    %p42 = scmp.eq.s32.totalorder %s9, 0
    %p43 = por %p41, %p42
    %p44 = scmp.ne.s32.totalorder %s33, %s36
    %p45 = scmp.eq.s32.totalorder %s14, 1
    %p46 = por %p44, %p45
    %p47 = scmp.ne.s32.totalorder %s36, %s37
    %p48 = scmp.eq.s32.totalorder %s14, 0
    %p49 = por %p47, %p48
    %p50 = scmp.ne.s32.totalorder %s36, %s37
    %p51 = scmp.eq.s32.totalorder %s15, 1
    %p52 = por %p50, %p51
    %p54 = scmp.ne.s32.totalorder %s37, %s53
    %p55 = scmp.eq.s32.totalorder %s15, 0
    %p56 = por %p54, %p55
    %s57 = ssub.s32 %s16, %s28
    %s58 = ssub.s32 %s17, %s24
    %s59 = sor.u32 %s57, %s58
    %p60 = scmp.eq.s32.totalorder %s59, 0
    %s62 = sadd.s32 %s61, 1
    %s63 = scalar_select %p60, %s61, %s62
    %p66 = pneg %p60
    %p67 = scmp.eq.s32.totalorder %s9, 1
    %p68 = por %p66, %p67
    %p69 = scmp.ne.s32.totalorder %s61, %s64
    %p70 = scmp.eq.s32.totalorder %s9, 0
    %p71 = por %p69, %p70
    %p72 = scmp.ne.s32.totalorder %s61, %s64
    %p73 = scmp.eq.s32.totalorder %s14, 1
    %p74 = por %p72, %p73
    %p75 = scmp.ne.s32.totalorder %s64, %s65
    %p76 = scmp.eq.s32.totalorder %s14, 0
    %p77 = por %p75, %p76
    %p78 = scmp.ne.s32.totalorder %s64, %s65
    %p79 = scmp.eq.s32.totalorder %s15, 1
    %p80 = por %p78, %p79
    %p82 = scmp.ne.s32.totalorder %s65, %s81
    %p83 = scmp.eq.s32.totalorder %s15, 0
    %p84 = por %p82, %p83
    %s85 = ssub.s32 %s16, %s28
    %s86 = ssub.s32 %s17, %s24
    %s87 = sor.u32 %s85, %s86
    %p88 = scmp.eq.s32.totalorder %s87, 0
    %s90 = sadd.s32 %s89, 1
    %s91 = scalar_select %p88, %s89, %s90
    %p94 = pneg %p88
    %p95 = scmp.eq.s32.totalorder %s9, 1
    %p96 = por %p94, %p95
    %p97 = scmp.ne.s32.totalorder %s89, %s92
    %p98 = scmp.eq.s32.totalorder %s9, 0
    %p99 = por %p97, %p98
    %p100 = scmp.ne.s32.totalorder %s89, %s92
    %p101 = scmp.eq.s32.totalorder %s14, 1
    %p102 = por %p100, %p101
    %p103 = scmp.ne.s32.totalorder %s92, %s93
    %p104 = scmp.eq.s32.totalorder %s14, 0
    %p105 = por %p103, %p104
    %p106 = scmp.ne.s32.totalorder %s92, %s93
    %p107 = scmp.eq.s32.totalorder %s15, 1
    %p108 = por %p106, %p107
    %p110 = scmp.ne.s32.totalorder %s93, %s109
    %p111 = scmp.eq.s32.totalorder %s15, 0
    %p112 = por %p110, %p111
    %p113 = scmp.le.s32.totalorder 1, %s9
    %p114 = scmp.lt.s32.totalorder %s9, 3
    %p115 = pnand %p113, %p114
    %p116 = pneg %p115
    // Predicated region
    $region9: #{split_forward.1} parent=5 // pred_check
      _
    $region10: #{split_forward.1} parent=5 // pred_check_branch
      %118 = sbr.rel (%p115) target = $region12
    $region11: #{split_forward.1} parent=5 // pred_region
      %s119 = ssub.s32 %s9, 1
    $region12: #{split_forward.1} parent=5 // pred_fallthru
      _
    %p120 = scmp.lt.s32.totalorder %s9, 2
    // Predicated region
    $region13: #{split_forward.1} parent=5 // pred_check
      %p121 = pneg %p120
    $region14: #{split_forward.1} parent=5 // pred_check_branch
      %123 = sbr.rel (%p121) target = $region16
    $region15: #{split_forward.1} parent=5 // pred_region
      // Predicated region
      $region17: #{split_forward.1} parent=15 // pred_check
        %p124 = pneg %p43
      $region18: #{split_forward.1} parent=15 // pred_check_branch
        %126 = sbr.rel (%p124) target = $region20
      $region19: #{split_forward.1} parent=15 // pred_region
        %s127 = smul.u32 2, %s17
        %p128 = scmp.lt.s32.totalorder %s16, 1
        %s129 = scalar_select %p128, %s16, 1
        %p130 = scmp.lt.s32.totalorder %s127, 1
        %s131 = scalar_select %p130, %s127, 1
        %s132 = smul.addr %s129, 2
        %s133 = sadd.s32 %s131, %s132
        %s134 = smul.addr %s133, 4
        %s135 = scalar_lea.vmem %s0, %s134
        %s136 = smul.u32 2, %s17
      $region20: #{split_forward.1} parent=15 // pred_fallthru
        _
    $region16: #{split_forward.1} parent=5 // pred_fallthru
      _
    %p137 = scmp.le.s32.totalorder 1, %s9
    %p138 = scmp.lt.s32.totalorder %s9, 3
    %p139 = pnand %p137, %p138
    %p140 = pneg %p139
    // Predicated region
    $region21: #{split_forward.1} parent=5 // pred_check
      _
    $region22: #{split_forward.1} parent=5 // pred_check_branch
      %142 = sbr.rel (%p139) target = $region24
    $region23: #{split_forward.1} parent=5 // pred_region
      %s143 = ssub.s32 %s9, 1
      %s144 = smul.u32 2, %s19
      %p145 = scmp.lt.s32.totalorder %s18, 1
      %s146 = scalar_select %p145, %s18, 1
      %p147 = scmp.lt.s32.totalorder %s144, 1
      %s148 = scalar_select %p147, %s144, 1
      %s149 = smul.addr %s146, 2
      %s150 = sadd.s32 %s148, %s149
      %s151 = smul.addr %s150, 4
      %s152 = scalar_lea.vmem %s0, %s151
      %p153 = pneg %p49
      %p154 = pneg %p46
      %p155 = pneg %p77
      %p156 = pneg %p74
      %s157 = smul.u32 2, %s19
      %p158 = scmp.lt.s32.totalorder %s18, 1
      %s159 = scalar_select %p158, %s18, 1
      %p160 = scmp.lt.s32.totalorder %s157, 1
      %s161 = scalar_select %p160, %s157, 1
      %s162 = smul.addr %s159, 2
      %s163 = sadd.s32 %s161, %s162
      %s164 = smul.addr %s163, 2
      %s165 = scalar_lea.vmem %s1, %s164
      %p166 = pneg %p105
      %p167 = pneg %p102
      %s168 = smul.u32 2, %s19
      %p169 = scmp.lt.s32.totalorder %s18, 1
      %s170 = scalar_select %p169, %s18, 1
      %p171 = scmp.lt.s32.totalorder %s168, 1
      %s172 = scalar_select %p171, %s168, 1
      %s173 = smul.addr %s170, 2
      %s174 = sadd.s32 %s172, %s173
      %s175 = smul.addr %s174, 2
      %s176 = scalar_lea.vmem %s2, %s175
      %s177 = smul.u32 2, %s19
      %p178 = scmp.lt.s32.totalorder %s18, 1
      %s179 = scalar_select %p178, %s18, 1
      %p180 = scmp.lt.s32.totalorder %s177, 1
      %s181 = scalar_select %p180, %s177, 1
      %s182 = smul.addr %s179, 2
      %s183 = sadd.s32 %s181, %s182
      %s184 = smul.addr %s183, 4
      %s185 = scalar_lea.vmem %s0, %s184
      %s186 = smul.u32 2, %s19
      %s187 = smul.u32 2, %s19
      %p188 = scmp.lt.s32.totalorder %s18, 1
      %s189 = scalar_select %p188, %s18, 1
      %p190 = scmp.lt.s32.totalorder %s187, 1
      %s191 = scalar_select %p190, %s187, 1
      %s192 = smul.addr %s189, 2
      %s193 = sadd.s32 %s191, %s192
      %s194 = smul.addr %s193, 2
      %s195 = scalar_lea.vmem %s1, %s194
      %s196 = smul.u32 2, %s19
      %s197 = smul.u32 2, %s19
      %p198 = scmp.lt.s32.totalorder %s18, 1
      %s199 = scalar_select %p198, %s18, 1
      %p200 = scmp.lt.s32.totalorder %s197, 1
      %s201 = scalar_select %p200, %s197, 1
      %s202 = smul.addr %s199, 2
      %s203 = sadd.s32 %s201, %s202
      %s204 = smul.addr %s203, 2
      %s205 = scalar_lea.vmem %s2, %s204
      %s206 = smul.u32 2, %s19
      %v207 = vld [vmem:[%s185] sm:$0xff]
      %v210 = vunpack.c.l.s4 1983009808
      %v211 = vunpack.c.0.s8 %v210
      %v212 = vlaneseq
      %v213 = vshrl.u32 %v212, 7
      %v214 = vsub.s32 %v211, %v213
      %v215 = vrot.slane %v207, %v214
      %217 = vst [vmem:[%s195] sm:$0xf] %v215
      %v218 = vcombine.high %v215, %v215
      %220 = vst [vmem:[%s205] sm:$0xf] %v218
      %s221 = smul.u32 2, %s19
      %p222 = scmp.lt.s32.totalorder %s18, 1
      %s223 = scalar_select %p222, %s18, 1
      %p224 = scmp.lt.s32.totalorder %s221, 1
      %s225 = scalar_select %p224, %s221, 1
      %s226 = smul.addr %s223, 2
      %s227 = sadd.s32 %s225, %s226
      %s228 = smul.addr %s227, 2
      %s229 = scalar_lea.vmem %s1, %s228
      %s230 = smul.u32 2, %s19
      %p231 = scmp.lt.s32.totalorder %s18, 1
      %s232 = scalar_select %p231, %s18, 1
      %p233 = scmp.lt.s32.totalorder %s230, 1
      %s234 = scalar_select %p233, %s230, 1
      %s235 = smul.addr %s232, 2
      %s236 = sadd.s32 %s234, %s235
      %s237 = smul.addr %s236, 2
      %s238 = scalar_lea.vmem %s2, %s237
      // Predicated region
      $region25: #{split_forward.1} parent=23 // pred_check
        %p239 = pneg %p74
      $region26: #{split_forward.1} parent=23 // pred_check_branch
        %241 = sbr.rel (%p239) target = $region28
      $region27: #{split_forward.1} parent=23 // pred_region
        %s242 = smul.u32 2, %s19
      $region28: #{split_forward.1} parent=23 // pred_fallthru
        _
      // Predicated region
      $region29: #{split_forward.1} parent=23 // pred_check
        %p243 = pneg %p102
      $region30: #{split_forward.1} parent=23 // pred_check_branch
        %245 = sbr.rel (%p243) target = $region32
      $region31: #{split_forward.1} parent=23 // pred_region
        %s246 = smul.u32 2, %s19
      $region32: #{split_forward.1} parent=23 // pred_fallthru
        _
    $region24: #{split_forward.1} parent=5 // pred_fallthru
      _
    %p247 = scmp.le.s32.totalorder 2, %s9
    // Predicated region
    $region33: #{split_forward.1} parent=5 // pred_check
      %p248 = pneg %p247
    $region34: #{split_forward.1} parent=5 // pred_check_branch
      %250 = sbr.rel (%p248) target = $region36
    $region35: #{split_forward.1} parent=5 // pred_region
      %s251 = ssub.s32 %s9, 2
      // Predicated region
      $region37: #{split_forward.1} parent=35 // pred_check
        %p252 = pneg %p80
      $region38: #{split_forward.1} parent=35 // pred_check_branch
        %254 = sbr.rel (%p252) target = $region40
      $region39: #{split_forward.1} parent=35 // pred_region
        %s255 = smul.u32 2, %s21
        %p256 = scmp.lt.s32.totalorder %s20, 1
        %s257 = scalar_select %p256, %s20, 1
        %p258 = scmp.lt.s32.totalorder %s255, 1
        %s259 = scalar_select %p258, %s255, 1
        %s260 = smul.addr %s257, 2
        %s261 = sadd.s32 %s259, %s260
        %s262 = smul.addr %s261, 2
        %s263 = scalar_lea.vmem %s1, %s262
      $region40: #{split_forward.1} parent=35 // pred_fallthru
        _
      // Predicated region
      $region41: #{split_forward.1} parent=35 // pred_check
        %p264 = pneg %p108
      $region42: #{split_forward.1} parent=35 // pred_check_branch
        %266 = sbr.rel (%p264) target = $region44
      $region43: #{split_forward.1} parent=35 // pred_region
        %s267 = smul.u32 2, %s21
        %p268 = scmp.lt.s32.totalorder %s20, 1
        %s269 = scalar_select %p268, %s20, 1
        %p270 = scmp.lt.s32.totalorder %s267, 1
        %s271 = scalar_select %p270, %s267, 1
        %s272 = smul.addr %s269, 2
        %s273 = sadd.s32 %s271, %s272
        %s274 = smul.addr %s273, 2
        %s275 = scalar_lea.vmem %s2, %s274
      $region44: #{split_forward.1} parent=35 // pred_fallthru
        _
    $region36: #{split_forward.1} parent=5 // pred_fallthru
      _
  $region6: #{split_forward.1} parent=0 // loop_footer
    %s13 = sadd.s32 1, %s9
  $region7: #{split_forward.1} parent=0 // loop_footer_branch
    %8 = sbr.rel target = $region3
  $region8: #{split_forward.1} parent=0 // loop_exit
    _

</llo_original>
